<compile_context>
chip_gen: v6e
topology: v6e:2x2x1
jax: 0.10.0
libtpu: 0.0.40
codegen_flags: <defaults>
</compile_context>

<pallas_src>
import functools

import jax
import jax.numpy as jnp
from jax.experimental import pallas as pl
from jax.experimental.pallas import tpu as pltpu


def _round_up(n, m):
    return ((n + m - 1) // m) * m


def small_rnn_kernel(x_ref, wih_ref, whh_ref, b_ref, wfc_ref, bfc_ref, out_ref,
                     *, seq_len, batch):
    """All operands are VMEM-resident, lane-dense tiles.

    x_ref   : (T*B_pad, I)      time-major, batch-padded input (flattened)
    wih_ref : (I, H_pad)        input->hidden weight, right-multiply form
    whh_ref : (H_pad, H_pad)    hidden->hidden weight, right-multiply form
    b_ref   : (1, H_pad)        pre-summed bias (b_ih + b_hh), zero-padded
    wfc_ref : (H_pad, O_pad)    final linear weight, zero-padded
    bfc_ref : (1, O_pad)
    out_ref : (B_pad, O_pad)
    """
    # Hoisted input projection: one (T*B, I)x(I, H_pad) MXU matmul with the
    # pre-summed bias folded in. Only h @ W_hh + tanh remain on the serial
    # dependency chain below.
    xw = (jnp.dot(x_ref[...], wih_ref[...], preferred_element_type=jnp.float32)
          + b_ref[...])                                      # (T*B_pad, H_pad)

    # Fully-unrolled recurrence (T is small and static; live state is a single
    # (B_pad, H_pad) slab = B_pad/8 vregs).  h_0 = 0 => first step has no matmul.
    # For larger T, switch to lax.fori_loop(..., unroll=k) with pl.ds indexing
    # into xw so the live set stays bounded instead of all T slabs staying live.
    # NOTE: pltpu.matmul_push_rhs / matmul_acc_lhs / matmul_pop could hold W_hh
    # resident in the MXU across the serial steps; kept as jnp.dot on a
    # lane-native (128,128) RHS for portability across v5e/v6e/v7x (MRF vs MRB).
    whh = whh_ref[...]                                       # hoisted load
    h = jnp.tanh(xw[0:batch, :])
    for t in range(1, seq_len):
        h = jnp.tanh(jnp.dot(h, whh, preferred_element_type=jnp.float32)
                     + xw[t * batch:(t + 1) * batch, :])

    # Final FC writes a lane-dense (B_pad, O_pad >= 128) tile -> unmasked
    # vector stores; the wrapper slices back to (B, O).
    out_ref[...] = (jnp.dot(h, wfc_ref[...], preferred_element_type=jnp.float32)
                    + bfc_ref[...]).astype(out_ref.dtype)


@jax.jit
def small_rnn_forward(x, params):
    """x: (B, T, I) batch_first float32, matching the PyTorch module."""
    w_ih, w_hh, b_ih, b_hh, w_fc, b_fc = params
    B, T, I = x.shape
    H = w_hh.shape[0]
    O = w_fc.shape[0]

    # Pad batch to a sublane multiple (8), hidden and output dims to lane
    # multiples (128) so every in-kernel operand/tile is dense and lane-native.
    B_pad = max(8, _round_up(B, 8))
    H_pad = max(128, _round_up(H, 128))
    O_pad = max(128, _round_up(O, 128))

    # Time-major, batch-padded, flattened to (T*B_pad, I): the in-kernel input
    # projection is a single matmul and per-step slabs are static slices.
    # All of this fuses with the pallas_call under the enclosing jit.
    x_tm = jnp.transpose(x, (1, 0, 2))                        # (T, B, I)
    if B_pad != B:
        x_tm = jnp.pad(x_tm, ((0, 0), (0, B_pad - B), (0, 0)))
    x_flat = x_tm.reshape(T * B_pad, I)

    # Zero-padding keeps the math exact: padded bias entries and padded W_hh
    # rows/cols are 0 => padded h columns stay tanh(0)=0 through the
    # recurrence; padded W_fc rows are 0 => output unaffected.
    wih_t = jnp.pad(w_ih.T, ((0, 0), (0, H_pad - H)))         # (I, H_pad)
    whh_t = jnp.pad(w_hh.T, ((0, H_pad - H), (0, H_pad - H)))  # (H_pad, H_pad)
    b2 = jnp.pad((b_ih + b_hh).reshape(1, H),
                 ((0, 0), (0, H_pad - H)))                    # (1, H_pad)
    wfc_t = jnp.pad(w_fc.T, ((0, H_pad - H), (0, O_pad - O)))  # (H_pad, O_pad)
    bfc2 = jnp.pad(b_fc.reshape(1, O), ((0, 0), (0, O_pad - O)))  # (1, O_pad)

    in_bytes = 4 * (x_flat.size + wih_t.size + whh_t.size + b2.size
                    + wfc_t.size + bfc2.size)
    out_bytes = 4 * B_pad * O_pad
    cost = pl.CostEstimate(
        flops=(2 * T * B_pad * H_pad * I
               + 2 * (T - 1) * B_pad * H_pad * H_pad
               + 2 * B_pad * H_pad * O_pad),
        transcendentals=T * B_pad * H_pad,
        bytes_accessed=in_bytes + out_bytes,
    )

    # NOTE: at these shapes everything comfortably fits VMEM, so a single
    # invocation (no grid) with whole-array VMEM residency is optimal.  For
    # large T*B*I, switch to grid=(T,) streaming x (BlockSpec((1, B_tile, I),
    # t -> (t, 0, 0)), h carried in VMEM scratch, FC under @pl.when(last)),
    # add a 'parallel' batch-tile axis so v7x's second TensorCore is used, and
    # size B_tile against v7x's 64 MiB physical / 32 MiB scoped VMEM (inputs
    # are double-buffered) via pltpu.CompilerParams(vmem_limit_bytes=...).
    vmem = pl.BlockSpec(memory_space=pltpu.MemorySpace.VMEM)
    out = pl.pallas_call(
        functools.partial(small_rnn_kernel, seq_len=T, batch=B_pad),
        out_shape=jax.ShapeDtypeStruct((B_pad, O_pad), x.dtype),
        in_specs=[vmem] * 6,
        out_specs=vmem,
        cost_estimate=cost,
    )(x_flat, wih_t, whh_t, b2, wfc_t, bfc2)
    return out[:B, :O]


def ref_forward(x, params):
    """Pure-JAX reference of the PyTorch forward pass (correctness check)."""
    w_ih, w_hh, b_ih, b_hh, w_fc, b_fc = params
    B, T, _ = x.shape
    H = w_hh.shape[0]
    h = jnp.zeros((B, H), jnp.float32)
    for t in range(T):
        h = jnp.tanh(x[:, t, :] @ w_ih.T + b_ih + h @ w_hh.T + b_hh)
    return h @ w_fc.T + b_fc


def init_params(key, input_size, hidden_size, output_size):
    """Deterministic init mirroring nn.RNN / nn.Linear shapes, U(-1/sqrt(H), 1/sqrt(H))."""
    ks = jax.random.split(key, 6)
    bound = 1.0 / jnp.sqrt(jnp.float32(hidden_size))
    w_ih = jax.random.uniform(ks[0], (hidden_size, input_size), jnp.float32, -bound, bound)
    w_hh = jax.random.uniform(ks[1], (hidden_size, hidden_size), jnp.float32, -bound, bound)
    b_ih = jax.random.uniform(ks[2], (hidden_size,), jnp.float32, -bound, bound)
    b_hh = jax.random.uniform(ks[3], (hidden_size,), jnp.float32, -bound, bound)
    w_fc = jax.random.uniform(ks[4], (output_size, hidden_size), jnp.float32, -bound, bound)
    b_fc = jax.random.uniform(ks[5], (output_size,), jnp.float32, -bound, bound)
    return (w_ih, w_hh, b_ih, b_hh, w_fc, b_fc)


if __name__ == "__main__":
    # batch=2, seq_len=8, input_size=4, hidden_size=32, output_size=1
    B, T, I, H, O = 2, 8, 4, 32, 1

    key = jax.random.PRNGKey(0)
    k_x, k_p = jax.random.split(key)
    x = jax.random.normal(k_x, (B, T, I), jnp.float32)
    params = init_params(k_p, I, H, O)

    out = small_rnn_forward(x, params)
    out = jax.block_until_ready(out)

    ref = ref_forward(x, params)
    assert out.shape == (B, O)
    assert jnp.allclose(out, ref, atol=1e-5, rtol=1e-5), (out, ref)

    print("KERNEL_OK")
</pallas_src>

<mosaic_0001>
module attributes {stable_mosaic.version = 11 : i64} {
  func.func @small_rnn_kernel(%arg0: memref<64x4xf32, #tpu.memory_space<vmem>>, %arg1: memref<4x128xf32, #tpu.memory_space<vmem>>, %arg2: memref<128x128xf32, #tpu.memory_space<vmem>>, %arg3: memref<1x128xf32, #tpu.memory_space<vmem>>, %arg4: memref<128x128xf32, #tpu.memory_space<vmem>>, %arg5: memref<1x128xf32, #tpu.memory_space<vmem>>, %arg6: memref<8x128xf32, #tpu.memory_space<vmem>>) attributes {dimension_semantics = [], scalar_prefetch = 0 : i64, scratch_operands = 0 : i64, tpu.core_type = #tpu.core_type<tc>} {
    %c0 = arith.constant 0 : index
    %c0_0 = arith.constant 0 : index
    %0 = vector.load %arg0[%c0, %c0_0] : memref<64x4xf32, #tpu.memory_space<vmem>>, vector<64x4xf32>
    %c0_1 = arith.constant 0 : index
    %c0_2 = arith.constant 0 : index
    %1 = vector.load %arg1[%c0_1, %c0_2] : memref<4x128xf32, #tpu.memory_space<vmem>>, vector<4x128xf32>
    %cst = arith.constant dense<0.000000e+00> : vector<64x128xf32>
    %2 = tpu.matmul %0, %1, %cst {dimension_numbers = #tpu.dot_dimension_numbers<[1], [0], [0], [1], [0, 0, 1, 1], [], []>} : vector<64x4xf32>, vector<4x128xf32>, vector<64x128xf32> -> vector<64x128xf32>
    %c0_3 = arith.constant 0 : index
    %c0_4 = arith.constant 0 : index
    %3 = vector.load %arg3[%c0_3, %c0_4] : memref<1x128xf32, #tpu.memory_space<vmem>>, vector<1x128xf32>
    %4 = vector.broadcast %3 : vector<1x128xf32> to vector<64x128xf32>
    %5 = arith.addf %2, %4 : vector<64x128xf32>
    %c0_5 = arith.constant 0 : index
    %c0_6 = arith.constant 0 : index
    %6 = vector.load %arg2[%c0_5, %c0_6] : memref<128x128xf32, #tpu.memory_space<vmem>>, vector<128x128xf32>
    %7 = vector.extract_strided_slice %5 {offsets = [0, 0], sizes = [8, 128], strides = [1, 1]} : vector<64x128xf32> to vector<8x128xf32>
    %8 = math.tanh %7 : vector<8x128xf32>
    %cst_7 = arith.constant dense<0.000000e+00> : vector<8x128xf32>
    %9 = tpu.matmul %8, %6, %cst_7 {dimension_numbers = #tpu.dot_dimension_numbers<[1], [0], [0], [1], [0, 0, 1, 1], [], []>} : vector<8x128xf32>, vector<128x128xf32>, vector<8x128xf32> -> vector<8x128xf32>
    %10 = vector.extract_strided_slice %5 {offsets = [8, 0], sizes = [8, 128], strides = [1, 1]} : vector<64x128xf32> to vector<8x128xf32>
    %11 = arith.addf %9, %10 : vector<8x128xf32>
    %12 = math.tanh %11 : vector<8x128xf32>
    %cst_8 = arith.constant dense<0.000000e+00> : vector<8x128xf32>
    %13 = tpu.matmul %12, %6, %cst_8 {dimension_numbers = #tpu.dot_dimension_numbers<[1], [0], [0], [1], [0, 0, 1, 1], [], []>} : vector<8x128xf32>, vector<128x128xf32>, vector<8x128xf32> -> vector<8x128xf32>
    %14 = vector.extract_strided_slice %5 {offsets = [16, 0], sizes = [8, 128], strides = [1, 1]} : vector<64x128xf32> to vector<8x128xf32>
    %15 = arith.addf %13, %14 : vector<8x128xf32>
    %16 = math.tanh %15 : vector<8x128xf32>
    %cst_9 = arith.constant dense<0.000000e+00> : vector<8x128xf32>
    %17 = tpu.matmul %16, %6, %cst_9 {dimension_numbers = #tpu.dot_dimension_numbers<[1], [0], [0], [1], [0, 0, 1, 1], [], []>} : vector<8x128xf32>, vector<128x128xf32>, vector<8x128xf32> -> vector<8x128xf32>
    %18 = vector.extract_strided_slice %5 {offsets = [24, 0], sizes = [8, 128], strides = [1, 1]} : vector<64x128xf32> to vector<8x128xf32>
    %19 = arith.addf %17, %18 : vector<8x128xf32>
    %20 = math.tanh %19 : vector<8x128xf32>
    %cst_10 = arith.constant dense<0.000000e+00> : vector<8x128xf32>
    %21 = tpu.matmul %20, %6, %cst_10 {dimension_numbers = #tpu.dot_dimension_numbers<[1], [0], [0], [1], [0, 0, 1, 1], [], []>} : vector<8x128xf32>, vector<128x128xf32>, vector<8x128xf32> -> vector<8x128xf32>
    %22 = vector.extract_strided_slice %5 {offsets = [32, 0], sizes = [8, 128], strides = [1, 1]} : vector<64x128xf32> to vector<8x128xf32>
    %23 = arith.addf %21, %22 : vector<8x128xf32>
    %24 = math.tanh %23 : vector<8x128xf32>
    %cst_11 = arith.constant dense<0.000000e+00> : vector<8x128xf32>
    %25 = tpu.matmul %24, %6, %cst_11 {dimension_numbers = #tpu.dot_dimension_numbers<[1], [0], [0], [1], [0, 0, 1, 1], [], []>} : vector<8x128xf32>, vector<128x128xf32>, vector<8x128xf32> -> vector<8x128xf32>
    %26 = vector.extract_strided_slice %5 {offsets = [40, 0], sizes = [8, 128], strides = [1, 1]} : vector<64x128xf32> to vector<8x128xf32>
    %27 = arith.addf %25, %26 : vector<8x128xf32>
    %28 = math.tanh %27 : vector<8x128xf32>
    %cst_12 = arith.constant dense<0.000000e+00> : vector<8x128xf32>
    %29 = tpu.matmul %28, %6, %cst_12 {dimension_numbers = #tpu.dot_dimension_numbers<[1], [0], [0], [1], [0, 0, 1, 1], [], []>} : vector<8x128xf32>, vector<128x128xf32>, vector<8x128xf32> -> vector<8x128xf32>
    %30 = vector.extract_strided_slice %5 {offsets = [48, 0], sizes = [8, 128], strides = [1, 1]} : vector<64x128xf32> to vector<8x128xf32>
    %31 = arith.addf %29, %30 : vector<8x128xf32>
    %32 = math.tanh %31 : vector<8x128xf32>
    %cst_13 = arith.constant dense<0.000000e+00> : vector<8x128xf32>
    %33 = tpu.matmul %32, %6, %cst_13 {dimension_numbers = #tpu.dot_dimension_numbers<[1], [0], [0], [1], [0, 0, 1, 1], [], []>} : vector<8x128xf32>, vector<128x128xf32>, vector<8x128xf32> -> vector<8x128xf32>
    %34 = vector.extract_strided_slice %5 {offsets = [56, 0], sizes = [8, 128], strides = [1, 1]} : vector<64x128xf32> to vector<8x128xf32>
    %35 = arith.addf %33, %34 : vector<8x128xf32>
    %36 = math.tanh %35 : vector<8x128xf32>
    %c0_14 = arith.constant 0 : index
    %c0_15 = arith.constant 0 : index
    %37 = vector.load %arg4[%c0_14, %c0_15] : memref<128x128xf32, #tpu.memory_space<vmem>>, vector<128x128xf32>
    %cst_16 = arith.constant dense<0.000000e+00> : vector<8x128xf32>
    %38 = tpu.matmul %36, %37, %cst_16 {dimension_numbers = #tpu.dot_dimension_numbers<[1], [0], [0], [1], [0, 0, 1, 1], [], []>} : vector<8x128xf32>, vector<128x128xf32>, vector<8x128xf32> -> vector<8x128xf32>
    %c0_17 = arith.constant 0 : index
    %c0_18 = arith.constant 0 : index
    %39 = vector.load %arg5[%c0_17, %c0_18] : memref<1x128xf32, #tpu.memory_space<vmem>>, vector<1x128xf32>
    %40 = vector.broadcast %39 : vector<1x128xf32> to vector<8x128xf32>
    %41 = arith.addf %38, %40 : vector<8x128xf32>
    %c0_19 = arith.constant 0 : index
    %c0_20 = arith.constant 0 : index
    %42 = vector.load %arg6[%c0_19, %c0_20] : memref<8x128xf32, #tpu.memory_space<vmem>>, vector<8x128xf32>
    tpu.vector_store %arg6[%c0_19, %c0_20], %41 {strides = array<i32>} : memref<8x128xf32, #tpu.memory_space<vmem>>, vector<8x128xf32>,
    return
  }
}

</mosaic_0001>

<llo_original>
// kernel: small_rnn_forward.1
$region0: #{small_rnn_forward.1}
  #allocation0 [shape = 'u32[]', space=smem, size = 0x4, offset = 0x4, fixed_abs, tag = 'smem constant byte address 0x4 - core index']
  #allocation1 [shape = 'u32[144,128]{1,0:T(1,128)}', space=vmem, size = 0x12000, scoped, tag = 'internal scratch']
  %s0 = inlined_call_operand.vmem [shape: f32[64,4], index: 0, kind: input, shape index: {}]
  %s1 = inlined_call_operand.vmem [shape: f32[4,128], index: 1, kind: input, shape index: {}]
  %s2 = inlined_call_operand.vmem [shape: f32[128,128], index: 2, kind: input, shape index: {}]
  %s3 = inlined_call_operand.vmem [shape: f32[1,128], index: 3, kind: input, shape index: {}]
  %s4 = inlined_call_operand.vmem [shape: f32[128,128], index: 4, kind: input, shape index: {}]
  %s5 = inlined_call_operand.vmem [shape: f32[1,128], index: 5, kind: input, shape index: {}]
  %s6 = inlined_call_operand.vmem [shape: f32[8,128], index: 6, kind: output, shape index: {}]
  %s7 = sld [smem:[#allocation0]]
  $region34: #{small_rnn_forward.1} parent=0
    _
  %s9 = ssub.s32 1, %s7
  %s10 = scalar_select 0, %s9, %s7
  // Predicated region
  $region2: #{small_rnn_forward.1} parent=0 // pred_check
    _
  $region3: #{small_rnn_forward.1} parent=0 // pred_check_branch
    %12 = sbr.rel (0) target = $region5
  $region4: #{small_rnn_forward.1} parent=0 // pred_region
    _
  $region5: #{small_rnn_forward.1} parent=0 // pred_fallthru
    _
  // Predicated region
  $region6: #{small_rnn_forward.1} parent=0 // pred_check
    _
  $region7: #{small_rnn_forward.1} parent=0 // pred_check_branch
    %14 = sbr.rel (0) target = $region9
  $region8: #{small_rnn_forward.1} parent=0 // pred_region
    _
  $region9: #{small_rnn_forward.1} parent=0 // pred_fallthru
    _
  // Predicated region
  $region10: #{small_rnn_forward.1} parent=0 // pred_check
    _
  $region11: #{small_rnn_forward.1} parent=0 // pred_check_branch
    %16 = sbr.rel (0) target = $region13
  $region12: #{small_rnn_forward.1} parent=0 // pred_region
    _
  $region13: #{small_rnn_forward.1} parent=0 // pred_fallthru
    _
  // Predicated region
  $region14: #{small_rnn_forward.1} parent=0 // pred_check
    _
  $region15: #{small_rnn_forward.1} parent=0 // pred_check_branch
    %18 = sbr.rel (0) target = $region17
  $region16: #{small_rnn_forward.1} parent=0 // pred_region
    _
  $region17: #{small_rnn_forward.1} parent=0 // pred_fallthru
    _
  // Predicated region
  $region18: #{small_rnn_forward.1} parent=0 // pred_check
    _
  $region19: #{small_rnn_forward.1} parent=0 // pred_check_branch
    %20 = sbr.rel (0) target = $region21
  $region20: #{small_rnn_forward.1} parent=0 // pred_region
    _
  $region21: #{small_rnn_forward.1} parent=0 // pred_fallthru
    _
  // Predicated region
  $region22: #{small_rnn_forward.1} parent=0 // pred_check
    _
  $region23: #{small_rnn_forward.1} parent=0 // pred_check_branch
    %22 = sbr.rel (0) target = $region25
  $region24: #{small_rnn_forward.1} parent=0 // pred_region
    _
  $region25: #{small_rnn_forward.1} parent=0 // pred_fallthru
    _
  %v23 = vld [vmem:[%s0] sm:$0xff]
  %v24 = vld [vmem:[%s0 + $0x8] sm:$0xff]
  %v25 = vld [vmem:[%s0 + $0x10] sm:$0xff]
  %v26 = vld [vmem:[%s0 + $0x18] sm:$0xff]
  %v27 = vld [vmem:[%s0 + $0x20] sm:$0xff]
  %v28 = vld [vmem:[%s0 + $0x28] sm:$0xff]
  %v29 = vld [vmem:[%s0 + $0x30] sm:$0xff]
  %v30 = vld [vmem:[%s0 + $0x38] sm:$0xff]
  %v31 = vld [vmem:[%s1] sm:$0xf]
  %v32 = vld [vmem:[%s3] sm:$0x1]
  %v34 = vlaneseq
  %v35 = vshrl.u32 %v34, 7
  %v36 = vsub.s32 0, %v35
  %v37 = vrot.slane %v32, %v36
  %vm39 = vcmask 31744
  %v41 = vsel %vm39, %v23, 0
  %v44 = vsel %vm39, %v24, 0
  %v47 = vsel %vm39, %v25, 0
  %v50 = vsel %vm39, %v26, 0
  %v53 = vsel %vm39, %v27, 0
  %v56 = vsel %vm39, %v28, 0
  %v59 = vsel %vm39, %v29, 0
  %v62 = vsel %vm39, %v30, 0
  %vm64 = vcmask 1043456
  %v66 = vsel %vm64, %v31, 0
  %68 = vmatprep.subr.mxu0 0.0
  %69 = vmatpush1.msra.mxu0 0.0
  %70 = vmatprep.subr.mxu0 0.0
  %71 = vmatpush1.msra.mxu0 0.0
  %72 = vmatprep.subr.mxu0 0.0
  %73 = vmatpush1.msra.mxu0 0.0
  %74 = vmatprep.subr.mxu0 0.0
  %75 = vmatpush1.msra.mxu0 0.0
  %76 = vmatprep.subr.mxu0 0.0
  %77 = vmatpush1.msra.mxu0 0.0
  %78 = vmatprep.subr.mxu0 0.0
  %79 = vmatpush1.msra.mxu0 0.0
  %80 = vmatprep.subr.mxu0 0.0
  %81 = vmatpush1.msra.mxu0 0.0
  %82 = vmatprep.subr.mxu0 0.0
  %83 = vmatpush1.msra.mxu0 0.0
  %84 = vmatprep.subr.mxu0 0.0
  %85 = vmatpush1.msra.mxu0 0.0
  %86 = vmatprep.subr.mxu0 0.0
  %87 = vmatpush1.msra.mxu0 0.0
  %88 = vmatprep.subr.mxu0 0.0
  %89 = vmatpush1.msra.mxu0 0.0
  %90 = vmatprep.subr.mxu0 0.0
  %91 = vmatpush1.msra.mxu0 0.0
  %92 = vmatprep.subr.mxu0 0.0
  %93 = vmatpush1.msra.mxu0 0.0
  %94 = vmatprep.subr.mxu0 0.0
  %95 = vmatpush1.msra.mxu0 0.0
  %96 = vmatprep.subr.mxu0 0.0
  %97 = vmatpush1.msra.mxu0 0.0
  %98 = vmatprep.subr.mxu0 0.0
  %99 = vmatpush1.msra.mxu0 %v66
  %100 = vmatprep.subr.mxu0 0.0
  %101 = vmatpush2.msra.mxu0 0.0
  %102 = vmatprep.subr.mxu0 0.0
  %103 = vmatpush2.msra.mxu0 0.0
  %104 = vmatprep.subr.mxu0 0.0
  %105 = vmatpush2.msra.mxu0 0.0
  %106 = vmatprep.subr.mxu0 0.0
  %107 = vmatpush2.msra.mxu0 0.0
  %108 = vmatprep.subr.mxu0 0.0
  %109 = vmatpush2.msra.mxu0 0.0
  %110 = vmatprep.subr.mxu0 0.0
  %111 = vmatpush2.msra.mxu0 0.0
  %112 = vmatprep.subr.mxu0 0.0
  %113 = vmatpush2.msra.mxu0 0.0
  %114 = vmatprep.subr.mxu0 0.0
  %115 = vmatpush2.msra.mxu0 0.0
  %116 = vmatprep.subr.mxu0 0.0
  %117 = vmatpush2.msra.mxu0 0.0
  %118 = vmatprep.subr.mxu0 0.0
  %119 = vmatpush2.msra.mxu0 0.0
  %120 = vmatprep.subr.mxu0 0.0
  %121 = vmatpush2.msra.mxu0 0.0
  %122 = vmatprep.subr.mxu0 0.0
  %123 = vmatpush2.msra.mxu0 0.0
  %124 = vmatprep.subr.mxu0 0.0
  %125 = vmatpush2.msra.mxu0 0.0
  %126 = vmatprep.subr.mxu0 0.0
  %127 = vmatpush2.msra.mxu0 0.0
  %128 = vmatprep.subr.mxu0 0.0
  %129 = vmatpush2.msra.mxu0 0.0
  %130 = vmatprep.subr.mxu0 0.0
  %131 = vmatpush2.msra.mxu0 0.0
  %132 = vmatprep.mubr.f32.mxu0 0.0
  %133 = vmatmul.mubr.f32.gmra.mxu0 %v41
  %v134 = vpop.f32.mrf.mxu0
  %v135 = vadd.f32 %v37, %v134
  %v136 = vpop.f32.mrf.mxu0
  %137 = vmatprep.mubr.f32.mxu0 0.0
  %138 = vmatmul.mubr.f32.gmra.mxu0 %v44
  %v139 = vpop.f32.mrf.mxu0
  %v140 = vadd.f32 %v37, %v139
  %v141 = vpop.f32.mrf.mxu0
  %142 = vmatprep.mubr.f32.mxu0 0.0
  %143 = vmatmul.mubr.f32.gmra.mxu0 %v47
  %v144 = vpop.f32.mrf.mxu0
  %v145 = vadd.f32 %v37, %v144
  %v146 = vpop.f32.mrf.mxu0
  %147 = vmatprep.mubr.f32.mxu0 0.0
  %148 = vmatmul.mubr.f32.gmra.mxu0 %v50
  %v149 = vpop.f32.mrf.mxu0
  %v150 = vadd.f32 %v37, %v149
  %v151 = vpop.f32.mrf.mxu0
  %152 = vmatprep.mubr.f32.mxu0 0.0
  %153 = vmatmul.mubr.f32.gmra.mxu0 %v53
  %v154 = vpop.f32.mrf.mxu0
  %v155 = vadd.f32 %v37, %v154
  %v156 = vpop.f32.mrf.mxu0
  %157 = vmatprep.mubr.f32.mxu0 0.0
  %158 = vmatmul.mubr.f32.gmra.mxu0 %v56
  %v159 = vpop.f32.mrf.mxu0
  %v160 = vadd.f32 %v37, %v159
  %v161 = vpop.f32.mrf.mxu0
  %162 = vmatprep.mubr.f32.mxu0 0.0
  %163 = vmatmul.mubr.f32.gmra.mxu0 %v59
  %v164 = vpop.f32.mrf.mxu0
  %v165 = vadd.f32 %v37, %v164
  %v166 = vpop.f32.mrf.mxu0
  %167 = vmatprep.mubr.f32.mxu0 0.0
  %168 = vmatmul.mubr.f32.gmra.mxu0 %v62
  %v169 = vpop.f32.mrf.mxu0
  %v170 = vadd.f32 %v37, %v169
  %v171 = vpop.f32.mrf.mxu0
  %172 = vdwg.mxu0
  %v173 = vld [vmem:[%s2] sm:$0xff]
  %v174 = vld [vmem:[%s2 + $0x8] sm:$0xff]
  %v175 = vld [vmem:[%s2 + $0x10] sm:$0xff]
  %v176 = vld [vmem:[%s2 + $0x18] sm:$0xff]
  %v177 = vld [vmem:[%s2 + $0x20] sm:$0xff]
  %v178 = vld [vmem:[%s2 + $0x28] sm:$0xff]
  %v179 = vld [vmem:[%s2 + $0x30] sm:$0xff]
  %v180 = vld [vmem:[%s2 + $0x38] sm:$0xff]
  %v181 = vld [vmem:[%s2 + $0x40] sm:$0xff]
  %v182 = vld [vmem:[%s2 + $0x48] sm:$0xff]
  %v183 = vld [vmem:[%s2 + $0x50] sm:$0xff]
  %v184 = vld [vmem:[%s2 + $0x58] sm:$0xff]
  %v185 = vld [vmem:[%s2 + $0x60] sm:$0xff]
  %v186 = vld [vmem:[%s2 + $0x68] sm:$0xff]
  %v187 = vld [vmem:[%s2 + $0x70] sm:$0xff]
  %v188 = vld [vmem:[%s2 + $0x78] sm:$0xff]
  %v189 = vtanh.pop %v135
  %190 = vmatprep.subr.mxu0 0.0
  %191 = vmatpush1.msra.mxu0 %v188
  %192 = vmatprep.subr.mxu0 0.0
  %193 = vmatpush1.msra.mxu0 %v187
  %194 = vmatprep.subr.mxu0 0.0
  %195 = vmatpush1.msra.mxu0 %v186
  %196 = vmatprep.subr.mxu0 0.0
  %197 = vmatpush1.msra.mxu0 %v185
  %198 = vmatprep.subr.mxu0 0.0
  %199 = vmatpush1.msra.mxu0 %v184
  %200 = vmatprep.subr.mxu0 0.0
  %201 = vmatpush1.msra.mxu0 %v183
  %202 = vmatprep.subr.mxu0 0.0
  %203 = vmatpush1.msra.mxu0 %v182
  %204 = vmatprep.subr.mxu0 0.0
  %205 = vmatpush1.msra.mxu0 %v181
  %206 = vmatprep.subr.mxu0 0.0
  %207 = vmatpush1.msra.mxu0 %v180
  %208 = vmatprep.subr.mxu0 0.0
  %209 = vmatpush1.msra.mxu0 %v179
  %210 = vmatprep.subr.mxu0 0.0
  %211 = vmatpush1.msra.mxu0 %v178
  %212 = vmatprep.subr.mxu0 0.0
  %213 = vmatpush1.msra.mxu0 %v177
  %214 = vmatprep.subr.mxu0 0.0
  %215 = vmatpush1.msra.mxu0 %v176
  %216 = vmatprep.subr.mxu0 0.0
  %217 = vmatpush1.msra.mxu0 %v175
  %218 = vmatprep.subr.mxu0 0.0
  %219 = vmatpush1.msra.mxu0 %v174
  %220 = vmatprep.subr.mxu0 0.0
  %221 = vmatpush1.msra.mxu0 %v173
  %222 = vmatprep.subr.mxu0 0.0
  %223 = vmatpush2.msra.mxu0 0.0
  %224 = vmatprep.subr.mxu0 0.0
  %225 = vmatpush2.msra.mxu0 0.0
  %226 = vmatprep.subr.mxu0 0.0
  %227 = vmatpush2.msra.mxu0 0.0
  %228 = vmatprep.subr.mxu0 0.0
  %229 = vmatpush2.msra.mxu0 0.0
  %230 = vmatprep.subr.mxu0 0.0
  %231 = vmatpush2.msra.mxu0 0.0
  %232 = vmatprep.subr.mxu0 0.0
  %233 = vmatpush2.msra.mxu0 0.0
  %234 = vmatprep.subr.mxu0 0.0
  %235 = vmatpush2.msra.mxu0 0.0
  %236 = vmatprep.subr.mxu0 0.0
  %237 = vmatpush2.msra.mxu0 0.0
  %238 = vmatprep.subr.mxu0 0.0
  %239 = vmatpush2.msra.mxu0 0.0
  %240 = vmatprep.subr.mxu0 0.0
  %241 = vmatpush2.msra.mxu0 0.0
  %242 = vmatprep.subr.mxu0 0.0
  %243 = vmatpush2.msra.mxu0 0.0
  %244 = vmatprep.subr.mxu0 0.0
  %245 = vmatpush2.msra.mxu0 0.0
  %246 = vmatprep.subr.mxu0 0.0
  %247 = vmatpush2.msra.mxu0 0.0
  %248 = vmatprep.subr.mxu0 0.0
  %249 = vmatpush2.msra.mxu0 0.0
  %250 = vmatprep.subr.mxu0 0.0
  %251 = vmatpush2.msra.mxu0 0.0
  %252 = vmatprep.subr.mxu0 0.0
  %253 = vmatpush2.msra.mxu0 0.0
  %254 = vmatprep.mubr.f32.mxu0 0.0
  %255 = vmatmul.mubr.f32.gmra.mxu0 %v189
  %v256 = vpop.f32.mrf.mxu0
  %v257 = vadd.f32 %v140, %v256
  %v258 = vpop.f32.mrf.mxu0
  %259 = vdwg.mxu0
  %v260 = vtanh.pop %v257
  %261 = vmatprep.subr.mxu0 0.0
  %262 = vmatpush1.msra.mxu0 %v188
  %263 = vmatprep.subr.mxu0 0.0
  %264 = vmatpush1.msra.mxu0 %v187
  %265 = vmatprep.subr.mxu0 0.0
  %266 = vmatpush1.msra.mxu0 %v186
  %267 = vmatprep.subr.mxu0 0.0
  %268 = vmatpush1.msra.mxu0 %v185
  %269 = vmatprep.subr.mxu0 0.0
  %270 = vmatpush1.msra.mxu0 %v184
  %271 = vmatprep.subr.mxu0 0.0
  %272 = vmatpush1.msra.mxu0 %v183
  %273 = vmatprep.subr.mxu0 0.0
  %274 = vmatpush1.msra.mxu0 %v182
  %275 = vmatprep.subr.mxu0 0.0
  %276 = vmatpush1.msra.mxu0 %v181
  %277 = vmatprep.subr.mxu0 0.0
  %278 = vmatpush1.msra.mxu0 %v180
  %279 = vmatprep.subr.mxu0 0.0
  %280 = vmatpush1.msra.mxu0 %v179
  %281 = vmatprep.subr.mxu0 0.0
  %282 = vmatpush1.msra.mxu0 %v178
  %283 = vmatprep.subr.mxu0 0.0
  %284 = vmatpush1.msra.mxu0 %v177
  %285 = vmatprep.subr.mxu0 0.0
  %286 = vmatpush1.msra.mxu0 %v176
  %287 = vmatprep.subr.mxu0 0.0
  %288 = vmatpush1.msra.mxu0 %v175
  %289 = vmatprep.subr.mxu0 0.0
  %290 = vmatpush1.msra.mxu0 %v174
  %291 = vmatprep.subr.mxu0 0.0
  %292 = vmatpush1.msra.mxu0 %v173
  %293 = vmatprep.subr.mxu0 0.0
  %294 = vmatpush2.msra.mxu0 0.0
  %295 = vmatprep.subr.mxu0 0.0
  %296 = vmatpush2.msra.mxu0 0.0
  %297 = vmatprep.subr.mxu0 0.0
  %298 = vmatpush2.msra.mxu0 0.0
  %299 = vmatprep.subr.mxu0 0.0
  %300 = vmatpush2.msra.mxu0 0.0
  %301 = vmatprep.subr.mxu0 0.0
  %302 = vmatpush2.msra.mxu0 0.0
  %303 = vmatprep.subr.mxu0 0.0
  %304 = vmatpush2.msra.mxu0 0.0
  %305 = vmatprep.subr.mxu0 0.0
  %306 = vmatpush2.msra.mxu0 0.0
  %307 = vmatprep.subr.mxu0 0.0
  %308 = vmatpush2.msra.mxu0 0.0
  %309 = vmatprep.subr.mxu0 0.0
  %310 = vmatpush2.msra.mxu0 0.0
  %311 = vmatprep.subr.mxu0 0.0
  %312 = vmatpush2.msra.mxu0 0.0
  %313 = vmatprep.subr.mxu0 0.0
  %314 = vmatpush2.msra.mxu0 0.0
  %315 = vmatprep.subr.mxu0 0.0
  %316 = vmatpush2.msra.mxu0 0.0
  %317 = vmatprep.subr.mxu0 0.0
  %318 = vmatpush2.msra.mxu0 0.0
  %319 = vmatprep.subr.mxu0 0.0
  %320 = vmatpush2.msra.mxu0 0.0
  %321 = vmatprep.subr.mxu0 0.0
  %322 = vmatpush2.msra.mxu0 0.0
  %323 = vmatprep.subr.mxu0 0.0
  %324 = vmatpush2.msra.mxu0 0.0
  %325 = vmatprep.mubr.f32.mxu0 0.0
  %326 = vmatmul.mubr.f32.gmra.mxu0 %v260
  %v327 = vpop.f32.mrf.mxu0
  %v328 = vadd.f32 %v145, %v327
  %v329 = vpop.f32.mrf.mxu0
  %330 = vdwg.mxu0
  %v331 = vtanh.pop %v328
  %332 = vmatprep.subr.mxu0 0.0
  %333 = vmatpush1.msra.mxu0 %v188
  %334 = vmatprep.subr.mxu0 0.0
  %335 = vmatpush1.msra.mxu0 %v187
  %336 = vmatprep.subr.mxu0 0.0
  %337 = vmatpush1.msra.mxu0 %v186
  %338 = vmatprep.subr.mxu0 0.0
  %339 = vmatpush1.msra.mxu0 %v185
  %340 = vmatprep.subr.mxu0 0.0
  %341 = vmatpush1.msra.mxu0 %v184
  %342 = vmatprep.subr.mxu0 0.0
  %343 = vmatpush1.msra.mxu0 %v183
  %344 = vmatprep.subr.mxu0 0.0
  %345 = vmatpush1.msra.mxu0 %v182
  %346 = vmatprep.subr.mxu0 0.0
  %347 = vmatpush1.msra.mxu0 %v181
  %348 = vmatprep.subr.mxu0 0.0
  %349 = vmatpush1.msra.mxu0 %v180
  %350 = vmatprep.subr.mxu0 0.0
  %351 = vmatpush1.msra.mxu0 %v179
  %352 = vmatprep.subr.mxu0 0.0
  %353 = vmatpush1.msra.mxu0 %v178
  %354 = vmatprep.subr.mxu0 0.0
  %355 = vmatpush1.msra.mxu0 %v177
  %356 = vmatprep.subr.mxu0 0.0
  %357 = vmatpush1.msra.mxu0 %v176
  %358 = vmatprep.subr.mxu0 0.0
  %359 = vmatpush1.msra.mxu0 %v175
  %360 = vmatprep.subr.mxu0 0.0
  %361 = vmatpush1.msra.mxu0 %v174
  %362 = vmatprep.subr.mxu0 0.0
  %363 = vmatpush1.msra.mxu0 %v173
  %364 = vmatprep.subr.mxu0 0.0
  %365 = vmatpush2.msra.mxu0 0.0
  %366 = vmatprep.subr.mxu0 0.0
  %367 = vmatpush2.msra.mxu0 0.0
  %368 = vmatprep.subr.mxu0 0.0
  %369 = vmatpush2.msra.mxu0 0.0
  %370 = vmatprep.subr.mxu0 0.0
  %371 = vmatpush2.msra.mxu0 0.0
  %372 = vmatprep.subr.mxu0 0.0
  %373 = vmatpush2.msra.mxu0 0.0
  %374 = vmatprep.subr.mxu0 0.0
  %375 = vmatpush2.msra.mxu0 0.0
  %376 = vmatprep.subr.mxu0 0.0
  %377 = vmatpush2.msra.mxu0 0.0
  %378 = vmatprep.subr.mxu0 0.0
  %379 = vmatpush2.msra.mxu0 0.0
  %380 = vmatprep.subr.mxu0 0.0
  %381 = vmatpush2.msra.mxu0 0.0
  %382 = vmatprep.subr.mxu0 0.0
  %383 = vmatpush2.msra.mxu0 0.0
  %384 = vmatprep.subr.mxu0 0.0
  %385 = vmatpush2.msra.mxu0 0.0
  %386 = vmatprep.subr.mxu0 0.0
  %387 = vmatpush2.msra.mxu0 0.0
  %388 = vmatprep.subr.mxu0 0.0
  %389 = vmatpush2.msra.mxu0 0.0
  %390 = vmatprep.subr.mxu0 0.0
  %391 = vmatpush2.msra.mxu0 0.0
  %392 = vmatprep.subr.mxu0 0.0
  %393 = vmatpush2.msra.mxu0 0.0
  %394 = vmatprep.subr.mxu0 0.0
  %395 = vmatpush2.msra.mxu0 0.0
  %396 = vmatprep.mubr.f32.mxu0 0.0
  %397 = vmatmul.mubr.f32.gmra.mxu0 %v331
  %v398 = vpop.f32.mrf.mxu0
  %v399 = vadd.f32 %v150, %v398
  %v400 = vpop.f32.mrf.mxu0
  %401 = vdwg.mxu0
  %v402 = vtanh.pop %v399
  %403 = vmatprep.subr.mxu0 0.0
  %404 = vmatpush1.msra.mxu0 %v188
  %405 = vmatprep.subr.mxu0 0.0
  %406 = vmatpush1.msra.mxu0 %v187
  %407 = vmatprep.subr.mxu0 0.0
  %408 = vmatpush1.msra.mxu0 %v186
  %409 = vmatprep.subr.mxu0 0.0
  %410 = vmatpush1.msra.mxu0 %v185
  %411 = vmatprep.subr.mxu0 0.0
  %412 = vmatpush1.msra.mxu0 %v184
  %413 = vmatprep.subr.mxu0 0.0
  %414 = vmatpush1.msra.mxu0 %v183
  %415 = vmatprep.subr.mxu0 0.0
  %416 = vmatpush1.msra.mxu0 %v182
  %417 = vmatprep.subr.mxu0 0.0
  %418 = vmatpush1.msra.mxu0 %v181
  %419 = vmatprep.subr.mxu0 0.0
  %420 = vmatpush1.msra.mxu0 %v180
  %421 = vmatprep.subr.mxu0 0.0
  %422 = vmatpush1.msra.mxu0 %v179
  %423 = vmatprep.subr.mxu0 0.0
  %424 = vmatpush1.msra.mxu0 %v178
  %425 = vmatprep.subr.mxu0 0.0
  %426 = vmatpush1.msra.mxu0 %v177
  %427 = vmatprep.subr.mxu0 0.0
  %428 = vmatpush1.msra.mxu0 %v176
  %429 = vmatprep.subr.mxu0 0.0
  %430 = vmatpush1.msra.mxu0 %v175
  %431 = vmatprep.subr.mxu0 0.0
  %432 = vmatpush1.msra.mxu0 %v174
  %433 = vmatprep.subr.mxu0 0.0
  %434 = vmatpush1.msra.mxu0 %v173
  %435 = vmatprep.subr.mxu0 0.0
  %436 = vmatpush2.msra.mxu0 0.0
  %437 = vmatprep.subr.mxu0 0.0
  %438 = vmatpush2.msra.mxu0 0.0
  %439 = vmatprep.subr.mxu0 0.0
  %440 = vmatpush2.msra.mxu0 0.0
  %441 = vmatprep.subr.mxu0 0.0
  %442 = vmatpush2.msra.mxu0 0.0
  %443 = vmatprep.subr.mxu0 0.0
  %444 = vmatpush2.msra.mxu0 0.0
  %445 = vmatprep.subr.mxu0 0.0
  %446 = vmatpush2.msra.mxu0 0.0
  %447 = vmatprep.subr.mxu0 0.0
  %448 = vmatpush2.msra.mxu0 0.0
  %449 = vmatprep.subr.mxu0 0.0
  %450 = vmatpush2.msra.mxu0 0.0
  %451 = vmatprep.subr.mxu0 0.0
  %452 = vmatpush2.msra.mxu0 0.0
  %453 = vmatprep.subr.mxu0 0.0
  %454 = vmatpush2.msra.mxu0 0.0
  %455 = vmatprep.subr.mxu0 0.0
  %456 = vmatpush2.msra.mxu0 0.0
  %457 = vmatprep.subr.mxu0 0.0
  %458 = vmatpush2.msra.mxu0 0.0
  %459 = vmatprep.subr.mxu0 0.0
  %460 = vmatpush2.msra.mxu0 0.0
  %461 = vmatprep.subr.mxu0 0.0
  %462 = vmatpush2.msra.mxu0 0.0
  %463 = vmatprep.subr.mxu0 0.0
  %464 = vmatpush2.msra.mxu0 0.0
  %465 = vmatprep.subr.mxu0 0.0
  %466 = vmatpush2.msra.mxu0 0.0
  %467 = vmatprep.mubr.f32.mxu0 0.0
  %468 = vmatmul.mubr.f32.gmra.mxu0 %v402
  %v469 = vpop.f32.mrf.mxu0
  %v470 = vadd.f32 %v155, %v469
  %v471 = vpop.f32.mrf.mxu0
  %472 = vdwg.mxu0
  %v473 = vtanh.pop %v470
  %474 = vmatprep.subr.mxu0 0.0
  %475 = vmatpush1.msra.mxu0 %v188
  %476 = vmatprep.subr.mxu0 0.0
  %477 = vmatpush1.msra.mxu0 %v187
  %478 = vmatprep.subr.mxu0 0.0
  %479 = vmatpush1.msra.mxu0 %v186
  %480 = vmatprep.subr.mxu0 0.0
  %481 = vmatpush1.msra.mxu0 %v185
  %482 = vmatprep.subr.mxu0 0.0
  %483 = vmatpush1.msra.mxu0 %v184
  %484 = vmatprep.subr.mxu0 0.0
  %485 = vmatpush1.msra.mxu0 %v183
  %486 = vmatprep.subr.mxu0 0.0
  %487 = vmatpush1.msra.mxu0 %v182
  %488 = vmatprep.subr.mxu0 0.0
  %489 = vmatpush1.msra.mxu0 %v181
  %490 = vmatprep.subr.mxu0 0.0
  %491 = vmatpush1.msra.mxu0 %v180
  %492 = vmatprep.subr.mxu0 0.0
  %493 = vmatpush1.msra.mxu0 %v179
  %494 = vmatprep.subr.mxu0 0.0
  %495 = vmatpush1.msra.mxu0 %v178
  %496 = vmatprep.subr.mxu0 0.0
  %497 = vmatpush1.msra.mxu0 %v177
  %498 = vmatprep.subr.mxu0 0.0
  %499 = vmatpush1.msra.mxu0 %v176
  %500 = vmatprep.subr.mxu0 0.0
  %501 = vmatpush1.msra.mxu0 %v175
  %502 = vmatprep.subr.mxu0 0.0
  %503 = vmatpush1.msra.mxu0 %v174
  %504 = vmatprep.subr.mxu0 0.0
  %505 = vmatpush1.msra.mxu0 %v173
  %506 = vmatprep.subr.mxu0 0.0
  %507 = vmatpush2.msra.mxu0 0.0
  %508 = vmatprep.subr.mxu0 0.0
  %509 = vmatpush2.msra.mxu0 0.0
  %510 = vmatprep.subr.mxu0 0.0
  %511 = vmatpush2.msra.mxu0 0.0
  %512 = vmatprep.subr.mxu0 0.0
  %513 = vmatpush2.msra.mxu0 0.0
  %514 = vmatprep.subr.mxu0 0.0
  %515 = vmatpush2.msra.mxu0 0.0
  %516 = vmatprep.subr.mxu0 0.0
  %517 = vmatpush2.msra.mxu0 0.0
  %518 = vmatprep.subr.mxu0 0.0
  %519 = vmatpush2.msra.mxu0 0.0
  %520 = vmatprep.subr.mxu0 0.0
  %521 = vmatpush2.msra.mxu0 0.0
  %522 = vmatprep.subr.mxu0 0.0
  %523 = vmatpush2.msra.mxu0 0.0
  %524 = vmatprep.subr.mxu0 0.0
  %525 = vmatpush2.msra.mxu0 0.0
  %526 = vmatprep.subr.mxu0 0.0
  %527 = vmatpush2.msra.mxu0 0.0
  %528 = vmatprep.subr.mxu0 0.0
  %529 = vmatpush2.msra.mxu0 0.0
  %530 = vmatprep.subr.mxu0 0.0
  %531 = vmatpush2.msra.mxu0 0.0
  %532 = vmatprep.subr.mxu0 0.0
  %533 = vmatpush2.msra.mxu0 0.0
  %534 = vmatprep.subr.mxu0 0.0
  %535 = vmatpush2.msra.mxu0 0.0
  %536 = vmatprep.subr.mxu0 0.0
  %537 = vmatpush2.msra.mxu0 0.0
  %538 = vmatprep.mubr.f32.mxu0 0.0
  %539 = vmatmul.mubr.f32.gmra.mxu0 %v473
  %v540 = vpop.f32.mrf.mxu0
  %v541 = vadd.f32 %v160, %v540
  %v542 = vpop.f32.mrf.mxu0
  %543 = vdwg.mxu0
  %v544 = vtanh.pop %v541
  %545 = vmatprep.subr.mxu0 0.0
  %546 = vmatpush1.msra.mxu0 %v188
  %547 = vmatprep.subr.mxu0 0.0
  %548 = vmatpush1.msra.mxu0 %v187
  %549 = vmatprep.subr.mxu0 0.0
  %550 = vmatpush1.msra.mxu0 %v186
  %551 = vmatprep.subr.mxu0 0.0
  %552 = vmatpush1.msra.mxu0 %v185
  %553 = vmatprep.subr.mxu0 0.0
  %554 = vmatpush1.msra.mxu0 %v184
  %555 = vmatprep.subr.mxu0 0.0
  %556 = vmatpush1.msra.mxu0 %v183
  %557 = vmatprep.subr.mxu0 0.0
  %558 = vmatpush1.msra.mxu0 %v182
  %559 = vmatprep.subr.mxu0 0.0
  %560 = vmatpush1.msra.mxu0 %v181
  %561 = vmatprep.subr.mxu0 0.0
  %562 = vmatpush1.msra.mxu0 %v180
  %563 = vmatprep.subr.mxu0 0.0
  %564 = vmatpush1.msra.mxu0 %v179
  %565 = vmatprep.subr.mxu0 0.0
  %566 = vmatpush1.msra.mxu0 %v178
  %567 = vmatprep.subr.mxu0 0.0
  %568 = vmatpush1.msra.mxu0 %v177
  %569 = vmatprep.subr.mxu0 0.0
  %570 = vmatpush1.msra.mxu0 %v176
  %571 = vmatprep.subr.mxu0 0.0
  %572 = vmatpush1.msra.mxu0 %v175
  %573 = vmatprep.subr.mxu0 0.0
  %574 = vmatpush1.msra.mxu0 %v174
  %575 = vmatprep.subr.mxu0 0.0
  %576 = vmatpush1.msra.mxu0 %v173
  %577 = vmatprep.subr.mxu0 0.0
  %578 = vmatpush2.msra.mxu0 0.0
  %579 = vmatprep.subr.mxu0 0.0
  %580 = vmatpush2.msra.mxu0 0.0
  %581 = vmatprep.subr.mxu0 0.0
  %582 = vmatpush2.msra.mxu0 0.0
  %583 = vmatprep.subr.mxu0 0.0
  %584 = vmatpush2.msra.mxu0 0.0
  %585 = vmatprep.subr.mxu0 0.0
  %586 = vmatpush2.msra.mxu0 0.0
  %587 = vmatprep.subr.mxu0 0.0
  %588 = vmatpush2.msra.mxu0 0.0
  %589 = vmatprep.subr.mxu0 0.0
  %590 = vmatpush2.msra.mxu0 0.0
  %591 = vmatprep.subr.mxu0 0.0
  %592 = vmatpush2.msra.mxu0 0.0
  %593 = vmatprep.subr.mxu0 0.0
  %594 = vmatpush2.msra.mxu0 0.0
  %595 = vmatprep.subr.mxu0 0.0
  %596 = vmatpush2.msra.mxu0 0.0
  %597 = vmatprep.subr.mxu0 0.0
  %598 = vmatpush2.msra.mxu0 0.0
  %599 = vmatprep.subr.mxu0 0.0
  %600 = vmatpush2.msra.mxu0 0.0
  %601 = vmatprep.subr.mxu0 0.0
  %602 = vmatpush2.msra.mxu0 0.0
  %603 = vmatprep.subr.mxu0 0.0
  %604 = vmatpush2.msra.mxu0 0.0
  %605 = vmatprep.subr.mxu0 0.0
  %606 = vmatpush2.msra.mxu0 0.0
  %607 = vmatprep.subr.mxu0 0.0
  %608 = vmatpush2.msra.mxu0 0.0
  %609 = vmatprep.mubr.f32.mxu0 0.0
  %610 = vmatmul.mubr.f32.gmra.mxu0 %v544
  %v611 = vpop.f32.mrf.mxu0
  %v612 = vadd.f32 %v165, %v611
  %v613 = vpop.f32.mrf.mxu0
  %614 = vdwg.mxu0
  %v615 = vtanh.pop %v612
  %616 = vmatprep.subr.mxu0 0.0
  %617 = vmatpush1.msra.mxu0 %v188
  %618 = vmatprep.subr.mxu0 0.0
  %619 = vmatpush1.msra.mxu0 %v187
  %620 = vmatprep.subr.mxu0 0.0
  %621 = vmatpush1.msra.mxu0 %v186
  %622 = vmatprep.subr.mxu0 0.0
  %623 = vmatpush1.msra.mxu0 %v185
  %624 = vmatprep.subr.mxu0 0.0
  %625 = vmatpush1.msra.mxu0 %v184
  %626 = vmatprep.subr.mxu0 0.0
  %627 = vmatpush1.msra.mxu0 %v183
  %628 = vmatprep.subr.mxu0 0.0
  %629 = vmatpush1.msra.mxu0 %v182
  %630 = vmatprep.subr.mxu0 0.0
  %631 = vmatpush1.msra.mxu0 %v181
  %632 = vmatprep.subr.mxu0 0.0
  %633 = vmatpush1.msra.mxu0 %v180
  %634 = vmatprep.subr.mxu0 0.0
  %635 = vmatpush1.msra.mxu0 %v179
  %636 = vmatprep.subr.mxu0 0.0
  %637 = vmatpush1.msra.mxu0 %v178
  %638 = vmatprep.subr.mxu0 0.0
  %639 = vmatpush1.msra.mxu0 %v177
  %640 = vmatprep.subr.mxu0 0.0
  %641 = vmatpush1.msra.mxu0 %v176
  %642 = vmatprep.subr.mxu0 0.0
  %643 = vmatpush1.msra.mxu0 %v175
  %644 = vmatprep.subr.mxu0 0.0
  %645 = vmatpush1.msra.mxu0 %v174
  %646 = vmatprep.subr.mxu0 0.0
  %647 = vmatpush1.msra.mxu0 %v173
  %648 = vmatprep.subr.mxu0 0.0
  %649 = vmatpush2.msra.mxu0 0.0
  %650 = vmatprep.subr.mxu0 0.0
  %651 = vmatpush2.msra.mxu0 0.0
  %652 = vmatprep.subr.mxu0 0.0
  %653 = vmatpush2.msra.mxu0 0.0
  %654 = vmatprep.subr.mxu0 0.0
  %655 = vmatpush2.msra.mxu0 0.0
  %656 = vmatprep.subr.mxu0 0.0
  %657 = vmatpush2.msra.mxu0 0.0
  %658 = vmatprep.subr.mxu0 0.0
  %659 = vmatpush2.msra.mxu0 0.0
  %660 = vmatprep.subr.mxu0 0.0
  %661 = vmatpush2.msra.mxu0 0.0
  %662 = vmatprep.subr.mxu0 0.0
  %663 = vmatpush2.msra.mxu0 0.0
  %664 = vmatprep.subr.mxu0 0.0
  %665 = vmatpush2.msra.mxu0 0.0
  %666 = vmatprep.subr.mxu0 0.0
  %667 = vmatpush2.msra.mxu0 0.0
  %668 = vmatprep.subr.mxu0 0.0
  %669 = vmatpush2.msra.mxu0 0.0
  %670 = vmatprep.subr.mxu0 0.0
  %671 = vmatpush2.msra.mxu0 0.0
  %672 = vmatprep.subr.mxu0 0.0
  %673 = vmatpush2.msra.mxu0 0.0
  %674 = vmatprep.subr.mxu0 0.0
  %675 = vmatpush2.msra.mxu0 0.0
  %676 = vmatprep.subr.mxu0 0.0
  %677 = vmatpush2.msra.mxu0 0.0
  %678 = vmatprep.subr.mxu0 0.0
  %679 = vmatpush2.msra.mxu0 0.0
  %680 = vmatprep.mubr.f32.mxu0 0.0
  %681 = vmatmul.mubr.f32.gmra.mxu0 %v615
  %v682 = vpop.f32.mrf.mxu0
  %v683 = vadd.f32 %v170, %v682
  %v684 = vpop.f32.mrf.mxu0
  %685 = vdwg.mxu0
  %v686 = vtanh.pop %v683
  %v687 = vld [vmem:[%s4] sm:$0xff]
  %v688 = vld [vmem:[%s4 + $0x8] sm:$0xff]
  %v689 = vld [vmem:[%s4 + $0x10] sm:$0xff]
  %v690 = vld [vmem:[%s4 + $0x18] sm:$0xff]
  %v691 = vld [vmem:[%s4 + $0x20] sm:$0xff]
  %v692 = vld [vmem:[%s4 + $0x28] sm:$0xff]
  %v693 = vld [vmem:[%s4 + $0x30] sm:$0xff]
  %v694 = vld [vmem:[%s4 + $0x38] sm:$0xff]
  %v695 = vld [vmem:[%s4 + $0x40] sm:$0xff]
  %v696 = vld [vmem:[%s4 + $0x48] sm:$0xff]
  %v697 = vld [vmem:[%s4 + $0x50] sm:$0xff]
  %v698 = vld [vmem:[%s4 + $0x58] sm:$0xff]
  %v699 = vld [vmem:[%s4 + $0x60] sm:$0xff]
  %v700 = vld [vmem:[%s4 + $0x68] sm:$0xff]
  %v701 = vld [vmem:[%s4 + $0x70] sm:$0xff]
  %v702 = vld [vmem:[%s4 + $0x78] sm:$0xff]
  %v703 = vld [vmem:[%s5] sm:$0x1]
  %v705 = vlaneseq
  %v706 = vshrl.u32 %v705, 7
  %v707 = vsub.s32 0, %v706
  %v708 = vrot.slane %v703, %v707
  %710 = vmatprep.subr.mxu0 0.0
  %711 = vmatpush1.msra.mxu0 %v702
  %712 = vmatprep.subr.mxu0 0.0
  %713 = vmatpush1.msra.mxu0 %v701
  %714 = vmatprep.subr.mxu0 0.0
  %715 = vmatpush1.msra.mxu0 %v700
  %716 = vmatprep.subr.mxu0 0.0
  %717 = vmatpush1.msra.mxu0 %v699
  %718 = vmatprep.subr.mxu0 0.0
  %719 = vmatpush1.msra.mxu0 %v698
  %720 = vmatprep.subr.mxu0 0.0
  %721 = vmatpush1.msra.mxu0 %v697
  %722 = vmatprep.subr.mxu0 0.0
  %723 = vmatpush1.msra.mxu0 %v696
  %724 = vmatprep.subr.mxu0 0.0
  %725 = vmatpush1.msra.mxu0 %v695
  %726 = vmatprep.subr.mxu0 0.0
  %727 = vmatpush1.msra.mxu0 %v694
  %728 = vmatprep.subr.mxu0 0.0
  %729 = vmatpush1.msra.mxu0 %v693
  %730 = vmatprep.subr.mxu0 0.0
  %731 = vmatpush1.msra.mxu0 %v692
  %732 = vmatprep.subr.mxu0 0.0
  %733 = vmatpush1.msra.mxu0 %v691
  %734 = vmatprep.subr.mxu0 0.0
  %735 = vmatpush1.msra.mxu0 %v690
  %736 = vmatprep.subr.mxu0 0.0
  %737 = vmatpush1.msra.mxu0 %v689
  %738 = vmatprep.subr.mxu0 0.0
  %739 = vmatpush1.msra.mxu0 %v688
  %740 = vmatprep.subr.mxu0 0.0
  %741 = vmatpush1.msra.mxu0 %v687
  %742 = vmatprep.subr.mxu0 0.0
  %743 = vmatpush2.msra.mxu0 0.0
  %744 = vmatprep.subr.mxu0 0.0
  %745 = vmatpush2.msra.mxu0 0.0
  %746 = vmatprep.subr.mxu0 0.0
  %747 = vmatpush2.msra.mxu0 0.0
  %748 = vmatprep.subr.mxu0 0.0
  %749 = vmatpush2.msra.mxu0 0.0
  %750 = vmatprep.subr.mxu0 0.0
  %751 = vmatpush2.msra.mxu0 0.0
  %752 = vmatprep.subr.mxu0 0.0
  %753 = vmatpush2.msra.mxu0 0.0
  %754 = vmatprep.subr.mxu0 0.0
  %755 = vmatpush2.msra.mxu0 0.0
  %756 = vmatprep.subr.mxu0 0.0
  %757 = vmatpush2.msra.mxu0 0.0
  %758 = vmatprep.subr.mxu0 0.0
  %759 = vmatpush2.msra.mxu0 0.0
  %760 = vmatprep.subr.mxu0 0.0
  %761 = vmatpush2.msra.mxu0 0.0
  %762 = vmatprep.subr.mxu0 0.0
  %763 = vmatpush2.msra.mxu0 0.0
  %764 = vmatprep.subr.mxu0 0.0
  %765 = vmatpush2.msra.mxu0 0.0
  %766 = vmatprep.subr.mxu0 0.0
  %767 = vmatpush2.msra.mxu0 0.0
  %768 = vmatprep.subr.mxu0 0.0
  %769 = vmatpush2.msra.mxu0 0.0
  %770 = vmatprep.subr.mxu0 0.0
  %771 = vmatpush2.msra.mxu0 0.0
  %772 = vmatprep.subr.mxu0 0.0
  %773 = vmatpush2.msra.mxu0 0.0
  %774 = vmatprep.mubr.f32.mxu0 0.0
  %775 = vmatmul.mubr.f32.gmra.mxu0 %v686
  %v776 = vpop.f32.mrf.mxu0
  %v777 = vadd.f32 %v708, %v776
  %v778 = vpop.f32.mrf.mxu0
  %779 = vdwg.mxu0
  %780 = vst [vmem:[%s6] sm:$0xff] %v777
  // Predicated region
  $region26: #{small_rnn_forward.1} parent=0 // pred_check
    _
  $region27: #{small_rnn_forward.1} parent=0 // pred_check_branch
    %782 = sbr.rel (0) target = $region29
  $region28: #{small_rnn_forward.1} parent=0 // pred_region
    _
  $region29: #{small_rnn_forward.1} parent=0 // pred_fallthru
    _
  // Predicated region
  $region30: #{small_rnn_forward.1} parent=0 // pred_check
    _
  $region31: #{small_rnn_forward.1} parent=0 // pred_check_branch
    %784 = sbr.rel (0) target = $region33
  $region32: #{small_rnn_forward.1} parent=0 // pred_region
    _
  $region33: #{small_rnn_forward.1} parent=0 // pred_fallthru
    _

</llo_original>
